<compile_context>
chip_gen: v5e
topology: v5e:2x2
jax: 0.10.0
libtpu: 0.0.40
codegen_flags: <defaults>
</compile_context>

<pallas_src>
import jax
import jax.numpy as jnp
from jax.experimental import pallas as pl
from jax.experimental.pallas import tpu as pltpu


# --------------------------------------------------------------------------- #
# Kernel
# --------------------------------------------------------------------------- #
def rope_kernel(x_ref, a_ref, o_ref):
    # x_ref/o_ref: (TS, D) tile of one batch element; a_ref: (TS, D) table tile.
    #   A[:, 2k]   = cos,  A[:, 2k+1] = -sin
    #   out = A * x + B * pair_swap(x), with
    #   B[:, 2k]   = -sin = A[:, 2k+1]        (even lanes take A's next lane)
    #   B[:, 2k+1] =  sin = -A[:, 2k+1]       (odd lanes take -A)
    x = x_ref[...]
    a = a_ref[...]
    D = x.shape[-1]

    lane = jax.lax.broadcasted_iota(jnp.int32, x.shape, dimension=1)
    even = (lane & 1) == 0

    # Pair-swap adjacent lanes of x: even lane 2k takes x[2k+1], odd lane 2k+1
    # takes x[2k].  Two XLU rolls + a VPU select on the packed (native-dtype)
    # vregs; wrapped-around lanes are never selected, so wrap content is moot.
    x_next = pltpu.roll(x, shift=D - 1, axis=1)   # result[:, i] = x[:, (i+1) % D]
    x_prev = pltpu.roll(x, shift=1, axis=1)       # result[:, i] = x[:, (i-1) % D]
    x_swap = jnp.where(even, x_next, x_prev)

    # Derive B from A: only the "next lane" roll is needed (even lanes only).
    a_next = pltpu.roll(a, shift=D - 1, axis=1)
    b = jnp.where(even, a_next, -a)

    o_ref[...] = (a * x + b * x_swap).astype(o_ref.dtype)


# --------------------------------------------------------------------------- #
# Coefficient table (matches the module's __init__ buffers, interleaved)
# --------------------------------------------------------------------------- #
def make_rope_table(d_model, max_seq_len, dtype=jnp.float32):
    """Interleaved A table: A[:, 2k] = cos(pos*theta_k), A[:, 2k+1] = -sin."""
    theta = 1.0 / (10000.0 ** (jnp.arange(0, d_model, 2, dtype=jnp.float32) / d_model))
    pos = jnp.arange(max_seq_len, dtype=jnp.float32)[:, None]          # (L, 1)
    ang = pos * theta[None, :]                                         # (L, D/2)
    a = jnp.stack((jnp.cos(ang), -jnp.sin(ang)), axis=-1).reshape(max_seq_len, d_model)
    return a.astype(dtype)                                             # (L, D)


# --------------------------------------------------------------------------- #
# Generation-aware tiling
# --------------------------------------------------------------------------- #
def _vmem_budget_bytes():
    """(budget for double-buffered live blocks, vmem_limit for Mosaic)."""
    try:
        info = pltpu.get_tpu_info()
        cap = getattr(info, "vmem_capacity_bytes", None) or (64 << 20)
    except Exception:  # pragma: no cover - conservative fallback
        cap = 64 << 20
    budget = int(cap * 0.45)                      # live double-buffered blocks
    vmem_limit = min(int(cap * 0.9), budget + (16 << 20))
    return budget, vmem_limit


def _pick_seq_tile(S, D, x_itemsize, a_itemsize, vmem_budget_bytes):
    """Largest seq tile whose double-buffered footprint (x in + out + A table,
    at their real itemsizes) fits the budget.  Prefers sublane-aligned divisors
    of S; otherwise clamps (ragged last block handled by a cdiv grid)."""
    sub = {4: 8, 2: 16, 1: 32}.get(x_itemsize, 8)
    bytes_per_row = 2 * D * (2 * x_itemsize + a_itemsize)   # x2 for double buffer
    max_rows = max(sub, vmem_budget_bytes // bytes_per_row)

    if S <= max_rows:
        return S                       # single seq block (legal: equals full dim)

    best = None
    t = sub
    while t <= min(S, max_rows):
        if S % t == 0:
            best = t
        t += sub
    if best is not None:
        return best
    # No aligned divisor fits: clamp to the largest aligned tile; the grid uses
    # pl.cdiv so Pallas masks the ragged last block.
    return max(sub, (min(S, max_rows) // sub) * sub)


# --------------------------------------------------------------------------- #
# Wrapper
# --------------------------------------------------------------------------- #
def rope_forward(x, a_table):
    B, S, D = x.shape
    assert D % 2 == 0
    L = a_table.shape[0]
    x_item = jnp.dtype(x.dtype).itemsize
    a_item = jnp.dtype(a_table.dtype).itemsize

    budget, vmem_limit = _vmem_budget_bytes()
    TS = _pick_seq_tile(S, D, x_item, a_item, budget)
    n_s = pl.cdiv(S, TS)

    a = a_table
    if TS % 8 != 0:
        # Single non-sublane-aligned block: table block must equal full dims.
        a = a_table[:S]

    cost = pl.CostEstimate(
        flops=3 * B * S * D,
        bytes_accessed=2 * B * S * D * x_item + min(S, L) * D * a_item,
        transcendentals=0,
    )

    return pl.pallas_call(
        rope_kernel,
        out_shape=jax.ShapeDtypeStruct((B, S, D), x.dtype),
        grid=(n_s, B),  # batch innermost: table block index constant across it
        in_specs=[
            pl.BlockSpec((None, TS, D), lambda s, bb: (bb, s, 0)),  # x
            pl.BlockSpec((TS, D), lambda s, bb: (s, 0)),            # A table
        ],
        out_specs=pl.BlockSpec((None, TS, D), lambda s, bb: (bb, s, 0)),
        compiler_params=pltpu.CompilerParams(
            dimension_semantics=("parallel", "parallel"),
            vmem_limit_bytes=vmem_limit,
        ),
        cost_estimate=cost,
    )(x, a)


# --------------------------------------------------------------------------- #
# Pure-JAX reference (reproduces the PyTorch forward formulas exactly)
# --------------------------------------------------------------------------- #
def rope_reference(x, max_seq_len):
    B, S, D = x.shape
    theta = 1.0 / (10000.0 ** (jnp.arange(0, D, 2, dtype=jnp.float32) / D))
    pos = jnp.arange(max_seq_len, dtype=jnp.float32)[:, None]
    sin = jnp.sin(pos * theta)[:S]
    cos = jnp.cos(pos * theta)[:S]
    xe = x[..., ::2].astype(jnp.float32)
    xo = x[..., 1::2].astype(jnp.float32)
    re = xe * cos - xo * sin
    ro = xe * sin - xo * sin          # reproduces the module's sin-twice formula
    return jnp.stack((re, ro), axis=-1).reshape(x.shape).astype(x.dtype)


if __name__ == "__main__":
    # Small shapes consistent with the module: (batch, seq, d_model)
    B, S, D = 2, 16, 128
    MAX_SEQ = 32  # buffer length (module uses 2048; small here)

    # f32 table matches the f32 test input; pass dtype=jnp.bfloat16 for bf16
    # models (loosen the comparison tolerance accordingly).
    a_table = make_rope_table(D, MAX_SEQ, dtype=jnp.float32)

    key = jax.random.PRNGKey(0)
    x = jax.random.normal(key, (B, S, D), dtype=jnp.float32)

    out = jax.block_until_ready(rope_forward(x, a_table))

    ref = rope_reference(x, MAX_SEQ)
    assert out.shape == x.shape and out.dtype == x.dtype
    assert jnp.allclose(out, ref, atol=1e-5, rtol=1e-5)

    print("KERNEL_OK")
</pallas_src>

<mosaic_0001>
module attributes {stable_mosaic.version = 11 : i64} {
  func.func @rope_kernel(%arg0: i32, %arg1: i32, %arg2: memref<1x16x128xf32, #tpu.memory_space<vmem>>, %arg3: memref<16x128xf32, #tpu.memory_space<vmem>>, %arg4: memref<1x16x128xf32, #tpu.memory_space<vmem>>) attributes {dimension_semantics = [#tpu.dimension_semantics<parallel>, #tpu.dimension_semantics<parallel>], iteration_bounds = array<i64: 1, 2>, scalar_prefetch = 0 : i64, scratch_operands = 0 : i64, tpu.core_type = #tpu.core_type<tc>, window_params = [{transform_indices = @transform_0, window_bounds = array<i64: 1, 16, 128>}, {transform_indices = @transform_1, window_bounds = array<i64: 16, 128>}, {transform_indices = @transform_2, window_bounds = array<i64: 1, 16, 128>}]} {
    %c0 = arith.constant 0 : index
    %c0_0 = arith.constant 0 : index
    %c0_1 = arith.constant 0 : index
    %0 = vector.load %arg2[%c0, %c0_0, %c0_1] : memref<1x16x128xf32, #tpu.memory_space<vmem>>, vector<1x16x128xf32>
    %1 = vector.shape_cast %0 : vector<1x16x128xf32> to vector<16x128xf32>
    %c0_2 = arith.constant 0 : index
    %c0_3 = arith.constant 0 : index
    %2 = vector.load %arg3[%c0_2, %c0_3] : memref<16x128xf32, #tpu.memory_space<vmem>>, vector<16x128xf32>
    %3 = tpu.iota {dimensions = array<i32: 1>} : vector<16x128xi32>
    %c1_i32 = arith.constant 1 : i32
    %4 = vector.broadcast %c1_i32 : i32 to vector<16x128xi32>
    %5 = arith.andi %3, %4 : vector<16x128xi32>
    %c0_i32 = arith.constant 0 : i32
    %6 = vector.broadcast %c0_i32 : i32 to vector<16x128xi32>
    %7 = arith.cmpi eq, %5, %6 : vector<16x128xi32>
    %c127_i32 = arith.constant 127 : i32
    %8 = tpu.dynamic_rotate %1 by %c127_i32 dim 1 : vector<16x128xf32>, i32 -> vector<16x128xf32>
    %c1_i32_4 = arith.constant 1 : i32
    %9 = tpu.dynamic_rotate %1 by %c1_i32_4 dim 1 : vector<16x128xf32>, i32 -> vector<16x128xf32>
    %10 = arith.select %7, %8, %9 : vector<16x128xi1>, vector<16x128xf32>
    %c127_i32_5 = arith.constant 127 : i32
    %11 = tpu.dynamic_rotate %2 by %c127_i32_5 dim 1 : vector<16x128xf32>, i32 -> vector<16x128xf32>
    %cst = arith.constant 0.000000e+00 : f32
    %12 = vector.broadcast %cst : f32 to vector<16x128xf32>
    %13 = arith.subf %12, %2 : vector<16x128xf32>
    %14 = arith.select %7, %11, %13 : vector<16x128xi1>, vector<16x128xf32>
    %15 = arith.mulf %2, %1 : vector<16x128xf32>
    %16 = arith.mulf %14, %10 : vector<16x128xf32>
    %17 = arith.addf %15, %16 : vector<16x128xf32>
    %c0_6 = arith.constant 0 : index
    %c0_7 = arith.constant 0 : index
    %c0_8 = arith.constant 0 : index
    %18 = vector.load %arg4[%c0_6, %c0_7, %c0_8] : memref<1x16x128xf32, #tpu.memory_space<vmem>>, vector<1x16x128xf32>
    %19 = vector.shape_cast %18 : vector<1x16x128xf32> to vector<16x128xf32>
    %20 = vector.shape_cast %17 : vector<16x128xf32> to vector<1x16x128xf32>
    tpu.vector_store %arg4[%c0_6, %c0_7, %c0_8], %20 {strides = array<i32>} : memref<1x16x128xf32, #tpu.memory_space<vmem>>, vector<1x16x128xf32>,
    return
  }
  func.func @transform_0(%arg0: i32, %arg1: i32) -> (i32, i32, i32) {
    %c0_i32 = arith.constant 0 : i32
    %c0_i32_0 = arith.constant 0 : i32
    return %arg1, %arg0, %c0_i32 : i32, i32, i32
  }
  func.func @transform_1(%arg0: i32, %arg1: i32) -> (i32, i32) {
    %c0_i32 = arith.constant 0 : i32
    %c0_i32_0 = arith.constant 0 : i32
    return %arg0, %c0_i32 : i32, i32
  }
  func.func @transform_2(%arg0: i32, %arg1: i32) -> (i32, i32, i32) {
    %c0_i32 = arith.constant 0 : i32
    %c0_i32_0 = arith.constant 0 : i32
    return %arg1, %arg0, %c0_i32 : i32, i32, i32
  }
}

</mosaic_0001>

<llo_original>
// kernel: tpu_custom_call.1
$region0: #{tpu_custom_call.1}
  #allocation0 [shape = 'u32[]', space=smem, size = 0x4, offset = 0x4, fixed_abs, tag = 'smem constant byte address 0x4 - core index']
  #allocation1 [shape = 'u32[72,128]{1,0:T(1,128)}', space=vmem, size = 0x9000, scoped, tag = 'internal scratch']
  %s0 = inlined_call_operand.hbm [shape: f32[2,16,128], index: 0, kind: input, shape index: {}]
  %s1 = inlined_call_operand.hbm [shape: f32[32,128], index: 1, kind: input, shape index: {}]
  %s2 = inlined_call_operand.hbm [shape: f32[2,16,128], index: 2, kind: output, shape index: {}]
  %s3 = sld [smem:[#allocation0]]
  $region49: #{tpu_custom_call.1} parent=0
    _
  %s5 = ssub.s32 1, %s3
  %s6 = scalar_select 0, %s5, %s3
  $region1: #{tpu_custom_call.1} parent=0
    #allocation2 [shape = 'u8[16384]{0}', space=vmem, size = 0x4000, scoped, tag = 'input window, operand 0']
    #allocation3 [shape = 's32[2]{0}', space=sflag, size = 0x8, scoped, tag = 'scoped memory for tpu_custom_call.1']
    #allocation4 [shape = 's32[2]{0}', space=sflag, size = 0x8, scoped, tag = 'scoped memory for tpu_custom_call.1']
    #allocation5 [shape = 'u8[8192]{0}', space=vmem, size = 0x2000, scoped, tag = 'input window, operand 1, single buffered']
    #allocation6 [shape = 's32[1]{0}', space=sflag, size = 0x4, scoped, tag = 'scoped memory for tpu_custom_call.1']
    #allocation7 [shape = 'u8[16384]{0}', space=vmem, size = 0x4000, scoped, tag = 'output window, operand 0']
    %7 = vsyncpa [#allocation3], 0
    %s8 = scalar_lea.sflag [#allocation3], 1
    %9 = vsyncpa %s8, 0
    %10 = vsyncpa [#allocation6], 0
    %11 = vsyncpa [#allocation4], 0
    %s12 = scalar_lea.sflag [#allocation4], 1
    %13 = vsyncpa %s12, 0
    loop: start=0, step=1, limit=4
    $region2: #{tpu_custom_call.1} parent=1 // loop_pre_header
      _
    $region3: #{tpu_custom_call.1} parent=1 // loop_header
      %s15 = sphi 0, %s19
      %p16 = scmp.ge.s32.totalorder %s15, 4
      %s22 = sphi 0, %s34
      %s23 = sphi 0, %s30
      %s24 = sphi 0, %s22
      %s25 = sphi 0, %s23
      %s26 = sphi 0, %s24
      %s27 = sphi 0, %s25
      %s39 = sphi 0, %s41
      %s42 = sphi 0, %s39
      %s43 = sphi 0, %s42
      %s59 = sphi 0, %s43
      %s65 = sphi 0, %s67
      %s68 = sphi 0, %s65
      %s69 = sphi 0, %s68
      %s85 = sphi 0, %s69
      %s93 = sphi 0, %s95
      %s96 = sphi 0, %s93
      %s97 = sphi 0, %s96
      %s113 = sphi 0, %s97
    $region4: #{tpu_custom_call.1} parent=1 // loop_header_branch
      %18 = sbr.rel (%p16) target = $region8
    $region5: #{tpu_custom_call.1} parent=1 // loop_body
      %s20 = ssub.s32 %s15, 1
      %s21 = ssub.s32 %s15, 2
      %s28 = sadd.s32 1, %s23
      %p29 = scmp.ge.s32.totalorder %s28, 2
      %s30 = scalar_select %p29, 0, %s28
      %s31 = sadd.s32 1, %s22
      %s32 = scalar_select %p29, %s31, %s22
      %p33 = scmp.ge.s32.totalorder %s32, 1
      %s34 = scalar_select %p33, 0, %s32
      %s35 = ssub.s32 %s23, %s30
      %s36 = ssub.s32 %s22, %s34
      %s37 = sor.u32 %s35, %s36
      %p38 = scmp.eq.s32.totalorder %s37, 0
      %s40 = sadd.s32 %s39, 1
      %s41 = scalar_select %p38, %s39, %s40
      %p44 = pneg %p38
      %p45 = scmp.eq.s32.totalorder %s15, 1
      %p46 = por %p44, %p45
      %p47 = scmp.ne.s32.totalorder %s39, %s42
      %p48 = scmp.eq.s32.totalorder %s15, 0
      %p49 = por %p47, %p48
      %p50 = scmp.ne.s32.totalorder %s39, %s42
      %p51 = scmp.eq.s32.totalorder %s20, 1
      %p52 = por %p50, %p51
      %p53 = scmp.ne.s32.totalorder %s42, %s43
      %p54 = scmp.eq.s32.totalorder %s20, 0
      %p55 = por %p53, %p54
      %p56 = scmp.ne.s32.totalorder %s42, %s43
      %p57 = scmp.eq.s32.totalorder %s21, 1
      %p58 = por %p56, %p57
      %p60 = scmp.ne.s32.totalorder %s43, %s59
      %p61 = scmp.eq.s32.totalorder %s21, 0
      %p62 = por %p60, %p61
      %s63 = ssub.s32 %s22, %s34
      %p64 = scmp.eq.s32.totalorder %s63, 0
      %s66 = sadd.s32 %s65, 1
      %s67 = scalar_select %p64, %s65, %s66
      %p70 = pneg %p64
      %p71 = scmp.eq.s32.totalorder %s15, 1
      %p72 = por %p70, %p71
      %p73 = scmp.ne.s32.totalorder %s65, %s68
      %p74 = scmp.eq.s32.totalorder %s15, 0
      %p75 = por %p73, %p74
      %p76 = scmp.ne.s32.totalorder %s65, %s68
      %p77 = scmp.eq.s32.totalorder %s20, 1
      %p78 = por %p76, %p77
      %p79 = scmp.ne.s32.totalorder %s68, %s69
      %p80 = scmp.eq.s32.totalorder %s20, 0
      %p81 = por %p79, %p80
      %p82 = scmp.ne.s32.totalorder %s68, %s69
      %p83 = scmp.eq.s32.totalorder %s21, 1
      %p84 = por %p82, %p83
      %p86 = scmp.ne.s32.totalorder %s69, %s85
      %p87 = scmp.eq.s32.totalorder %s21, 0
      %p88 = por %p86, %p87
      %s89 = ssub.s32 %s23, %s30
      %s90 = ssub.s32 %s22, %s34
      %s91 = sor.u32 %s89, %s90
      %p92 = scmp.eq.s32.totalorder %s91, 0
      %s94 = sadd.s32 %s93, 1
      %s95 = scalar_select %p92, %s93, %s94
      %p98 = pneg %p92
      %p99 = scmp.eq.s32.totalorder %s15, 1
      %p100 = por %p98, %p99
      %p101 = scmp.ne.s32.totalorder %s93, %s96
      %p102 = scmp.eq.s32.totalorder %s15, 0
      %p103 = por %p101, %p102
      %p104 = scmp.ne.s32.totalorder %s93, %s96
      %p105 = scmp.eq.s32.totalorder %s20, 1
      %p106 = por %p104, %p105
      %p107 = scmp.ne.s32.totalorder %s96, %s97
      %p108 = scmp.eq.s32.totalorder %s20, 0
      %p109 = por %p107, %p108
      %p110 = scmp.ne.s32.totalorder %s96, %s97
      %p111 = scmp.eq.s32.totalorder %s21, 1
      %p112 = por %p110, %p111
      %p114 = scmp.ne.s32.totalorder %s97, %s113
      %p115 = scmp.eq.s32.totalorder %s21, 0
      %p116 = por %p114, %p115
      %p117 = scmp.le.s32.totalorder 1, %s15
      %p118 = scmp.lt.s32.totalorder %s15, 3
      %p119 = pnand %p117, %p118
      %p120 = pneg %p119
      // Predicated region
      $region9: #{tpu_custom_call.1} parent=5 // pred_check
        _
      $region10: #{tpu_custom_call.1} parent=5 // pred_check_branch
        %122 = sbr.rel (%p119) target = $region12
      $region11: #{tpu_custom_call.1} parent=5 // pred_region
        %s123 = ssub.s32 %s15, 1
        // Predicated region
        $region13: #{tpu_custom_call.1} parent=11 // pred_check
          %p124 = pneg %p81
        $region14: #{tpu_custom_call.1} parent=11 // pred_check_branch
          %126 = sbr.rel (%p124) target = $region16
        $region15: #{tpu_custom_call.1} parent=11 // pred_region
          %s127 = smul.u32 2, %s24
          %129 = vsyncadd [#allocation6], 0
          %s130 = smul.addr %s127, 8
          %s131 = scalar_lea.hbm %s1, %s130
          %s132 = sshll.u32 %s131, 4
          %s133 = int_to_ptr.hbm [resolvable:$true] %s132
          %s134 = sshll.u32 [#allocation5], 4
          %s135 = int_to_ptr.vmem [resolvable:$true] %s134
          %140 = dma.hbm_to_vmem [thread:$0]  %s133, 256, %s135, [#allocation6], 128, 128, 8
        $region16: #{tpu_custom_call.1} parent=11 // pred_fallthru
          _
      $region12: #{tpu_custom_call.1} parent=5 // pred_fallthru
        _
      %p141 = scmp.lt.s32.totalorder %s15, 2
      // Predicated region
      $region17: #{tpu_custom_call.1} parent=5 // pred_check
        %p142 = pneg %p141
      $region18: #{tpu_custom_call.1} parent=5 // pred_check_branch
        %144 = sbr.rel (%p142) target = $region20
      $region19: #{tpu_custom_call.1} parent=5 // pred_region
        // Predicated region
        $region21: #{tpu_custom_call.1} parent=19 // pred_check
          %p145 = pneg %p49
        $region22: #{tpu_custom_call.1} parent=19 // pred_check_branch
          %147 = sbr.rel (%p145) target = $region24
        $region23: #{tpu_custom_call.1} parent=19 // pred_region
          %s148 = sand.u32 %s39, 1
          %s149 = scalar_lea.sflag [#allocation3], %s148
          %s150 = sand.u32 %s39, 1
          %s151 = smul.addr %s150, 16
          %s152 = scalar_lea.vmem [#allocation2], %s151
          %s153 = smul.u32 2, %s22
          %155 = vsyncadd %s149, 0
          %s156 = smul.addr %s23, 2
          %s157 = sadd.s32 %s153, %s156
          %s158 = smul.addr %s157, 8
          %s159 = scalar_lea.hbm %s0, %s158
          %s160 = sshll.u32 %s159, 4
          %s161 = int_to_ptr.hbm [resolvable:$true] %s160
          %s162 = sshll.u32 %s152, 4
          %s163 = int_to_ptr.vmem [resolvable:$true] %s162
          %168 = dma.hbm_to_vmem [thread:$0]  %s161, 256, %s163, %s149, 128, 128, 8
        $region24: #{tpu_custom_call.1} parent=19 // pred_fallthru
          _
      $region20: #{tpu_custom_call.1} parent=5 // pred_fallthru
        _
      %p169 = scmp.le.s32.totalorder 1, %s15
      %p170 = scmp.lt.s32.totalorder %s15, 3
      %p171 = pnand %p169, %p170
      %p172 = pneg %p171
      // Predicated region
      $region25: #{tpu_custom_call.1} parent=5 // pred_check
        _
      $region26: #{tpu_custom_call.1} parent=5 // pred_check_branch
        %174 = sbr.rel (%p171) target = $region28
      $region27: #{tpu_custom_call.1} parent=5 // pred_region
        %s175 = ssub.s32 %s15, 1
        %s176 = sand.u32 %s42, 1
        %s177 = scalar_lea.sflag [#allocation3], %s176
        %s178 = sand.u32 %s42, 1
        %s179 = smul.addr %s178, 16
        %s180 = scalar_lea.vmem [#allocation2], %s179
        // Predicated region
        $region29: #{tpu_custom_call.1} parent=27 // pred_check
          %p181 = pneg %p55
        $region30: #{tpu_custom_call.1} parent=27 // pred_check_branch
          %183 = sbr.rel (%p181) target = $region32
        $region31: #{tpu_custom_call.1} parent=27 // pred_region
          %185 = dma.done %s177, 256
        $region32: #{tpu_custom_call.1} parent=27 // pred_fallthru
          _
        // Predicated region
        $region33: #{tpu_custom_call.1} parent=27 // pred_check
          %p186 = pneg %p81
        $region34: #{tpu_custom_call.1} parent=27 // pred_check_branch
          %188 = sbr.rel (%p186) target = $region36
        $region35: #{tpu_custom_call.1} parent=27 // pred_region
          %190 = dma.done [#allocation6], 256
        $region36: #{tpu_custom_call.1} parent=27 // pred_fallthru
          _
        %s191 = sand.u32 %s42, 1
        %s192 = scalar_lea.sflag [#allocation3], %s191
        %s193 = sand.u32 %s42, 1
        %s194 = smul.addr %s193, 16
        %s195 = scalar_lea.vmem [#allocation2], %s194
        %p196 = pneg %p55
        %p197 = pneg %p52
        %p198 = pneg %p81
        %p199 = pneg %p78
        %p200 = pneg %p109
        %p201 = pneg %p106
        %s202 = sand.u32 %s96, 1
        %s203 = scalar_lea.sflag [#allocation4], %s202
        %s204 = sand.u32 %s96, 1
        %s205 = smul.addr %s204, 16
        %s206 = scalar_lea.vmem [#allocation7], %s205
        %s207 = smul.u32 2, %s24
        %s208 = smul.u32 2, %s24
        %s209 = smul.u32 2, %s24
        %v210 = vld [vmem:[%s180] sm:$0xff]
        %v211 = vld [vmem:[%s180 + $0x8] sm:$0xff]
        %v212 = vld [vmem:[#allocation5] sm:$0xff]
        %v213 = vld [vmem:[#allocation5 + $0x8] sm:$0xff]
        %v214 = vlaneseq
        %v215 = vand.u32 %v214, 127
        %v216 = vand.u32 %v215, 1
        %vm217 = vcmp.eq.s32.totalorder %v216, 0
        %218 = vrot.lane.b32.xlu0 %v210, 127
        %v219 = vpop.permute.xlu0 %218
        %220 = vrot.lane.b32.xlu0 %v211, 127
        %v221 = vpop.permute.xlu0 %220
        %222 = vrot.lane.b32.xlu0 %v210, 1
        %v223 = vpop.permute.xlu0 %222
        %224 = vrot.lane.b32.xlu0 %v211, 1
        %v225 = vpop.permute.xlu0 %224
        %v226 = vsel %vm217, %v219, %v223
        %v227 = vsel %vm217, %v221, %v225
        %228 = vrot.lane.b32.xlu0 %v212, 127
        %v229 = vpop.permute.xlu0 %228
        %230 = vrot.lane.b32.xlu0 %v213, 127
        %v231 = vpop.permute.xlu0 %230
        %v232 = vsub.f32 0.0, %v212
        %v233 = vsub.f32 0.0, %v213
        %v234 = vsel %vm217, %v229, %v232
        %v235 = vsel %vm217, %v231, %v233
        %v236 = vmul.f32 %v212, %v210
        %v237 = vmul.f32 %v213, %v211
        %v238 = vmul.f32 %v234, %v226
        %v239 = vmul.f32 %v235, %v227
        %v240 = vadd.f32 %v236, %v238
        %v241 = vadd.f32 %v237, %v239
        %242 = vst [vmem:[%s206] sm:$0xff] %v240
        %243 = vst [vmem:[%s206 + $0x8] sm:$0xff] %v241
        %s244 = sand.u32 %s96, 1
        %s245 = scalar_lea.sflag [#allocation4], %s244
        %s246 = sand.u32 %s96, 1
        %s247 = smul.addr %s246, 16
        %s248 = scalar_lea.vmem [#allocation7], %s247
        // Predicated region
        $region37: #{tpu_custom_call.1} parent=27 // pred_check
          %p249 = pneg %p106
        $region38: #{tpu_custom_call.1} parent=27 // pred_check_branch
          %251 = sbr.rel (%p249) target = $region40
        $region39: #{tpu_custom_call.1} parent=27 // pred_region
          %s252 = smul.u32 2, %s24
          %254 = vsyncadd %s245, 0
          %s255 = smul.addr %s25, 2
          %s256 = sadd.s32 %s252, %s255
          %s257 = smul.addr %s256, 8
          %s258 = scalar_lea.hbm %s2, %s257
          %s259 = sshll.u32 %s248, 4
          %s260 = int_to_ptr.vmem [resolvable:$true] %s259
          %s261 = sshll.u32 %s258, 4
          %s262 = int_to_ptr.hbm [resolvable:$true] %s261
          %267 = dma.vmem_to_hbm [thread:$0]  %s260, 256, %s262, %s245, 128, 128, 8
        $region40: #{tpu_custom_call.1} parent=27 // pred_fallthru
          _
      $region28: #{tpu_custom_call.1} parent=5 // pred_fallthru
        _
      %p268 = scmp.le.s32.totalorder 2, %s15
      // Predicated region
      $region41: #{tpu_custom_call.1} parent=5 // pred_check
        %p269 = pneg %p268
      $region42: #{tpu_custom_call.1} parent=5 // pred_check_branch
        %271 = sbr.rel (%p269) target = $region44
      $region43: #{tpu_custom_call.1} parent=5 // pred_region
        %s272 = ssub.s32 %s15, 2
        // Predicated region
        $region45: #{tpu_custom_call.1} parent=43 // pred_check
          %p273 = pneg %p112
        $region46: #{tpu_custom_call.1} parent=43 // pred_check_branch
          %275 = sbr.rel (%p273) target = $region48
        $region47: #{tpu_custom_call.1} parent=43 // pred_region
          %s276 = sand.u32 %s97, 1
          %s277 = scalar_lea.sflag [#allocation4], %s276
          %s278 = sand.u32 %s97, 1
          %s279 = smul.addr %s278, 16
          %s280 = scalar_lea.vmem [#allocation7], %s279
          %282 = dma.done %s277, 256
        $region48: #{tpu_custom_call.1} parent=43 // pred_fallthru
          _
      $region44: #{tpu_custom_call.1} parent=5 // pred_fallthru
        _
    $region6: #{tpu_custom_call.1} parent=1 // loop_footer
      %s19 = sadd.s32 1, %s15
    $region7: #{tpu_custom_call.1} parent=1 // loop_footer_branch
      %14 = sbr.rel target = $region3
    $region8: #{tpu_custom_call.1} parent=1 // loop_exit
      _
    %283 = vsyncpa [#allocation3], 1
    %s284 = scalar_lea.sflag [#allocation3], 1
    %285 = vsyncpa %s284, 1
    %286 = vsyncpa [#allocation6], 1
    %287 = vsyncpa [#allocation4], 1
    %s288 = scalar_lea.sflag [#allocation4], 1
    %289 = vsyncpa %s288, 1

</llo_original>
